<compile_context>
chip_gen: v7x
topology: tpu7x:2x2x1
jax: 0.10.0
libtpu: 0.0.40
codegen_flags: <defaults>
</compile_context>

<pallas_src>
import functools

import jax
import jax.numpy as jnp
from jax.experimental import pallas as pl
from jax.experimental.pallas import tpu as pltpu


def _round_up(x, m):
    return (x + m - 1) // m * m


def _dc_ce_kernel(logits_ref, tgt_ref,
                  ce_out, tp_out, psum_out, cnt_out,
                  tp_acc, psum_acc, cnt_acc, ce_acc):
    """One (batch b, pixel-tile j) grid step.

    Classes live on the sublane axis, pixels on the 128-lane axis. Per-step
    work is elementwise adds into lane-wide VMEM accumulators; the cross-lane
    reduction + tiny output store runs once at the last pixel tile.
    """
    j = pl.program_id(1)

    @pl.when(j == 0)
    def _():
        tp_acc[...] = jnp.zeros_like(tp_acc)
        psum_acc[...] = jnp.zeros_like(psum_acc)
        cnt_acc[...] = jnp.zeros_like(cnt_acc)
        ce_acc[...] = jnp.zeros_like(ce_acc)

    x = logits_ref[...].astype(jnp.float32)            # (C, T)
    c, t = x.shape

    # numerically-stable softmax / log-softmax along the (small) class axis
    m = jnp.max(x, axis=0, keepdims=True)              # (1, T)
    z = x - m
    ez = jnp.exp(z)
    s = jnp.sum(ez, axis=0, keepdims=True)             # (1, T)
    p = ez * pl.reciprocal(s, approx=True)             # dice path (EUP vrcp)
    logs = jnp.log(s)                                  # exact path for CE

    tgt = tgt_ref[...]                                 # (1, T) int32, -1 = pad
    cls = jax.lax.broadcasted_iota(jnp.int32, (c, t), 0)
    onehot = (cls == tgt).astype(jnp.float32)          # (C, T), zero on padding
    valid = (tgt >= 0).astype(jnp.float32)             # (1, T)

    pm = p * valid                                     # mask padded pixels
    tp_acc[...] = tp_acc[...] + pm * onehot            # sum of p[target class]
    psum_acc[...] = psum_acc[...] + pm                 # sum of p per class
    cnt_acc[...] = cnt_acc[...] + onehot               # pixel count per class
    ce_acc[...] = ce_acc[...] + (logs - z) * onehot    # -log p[target]

    @pl.when(j == pl.num_programs(1) - 1)
    def _():
        tp_out[...] = jnp.sum(tp_acc[...], axis=1, keepdims=True)     # (C, 1)
        psum_out[...] = jnp.sum(psum_acc[...], axis=1, keepdims=True)  # (C, 1)
        cnt_out[...] = jnp.sum(cnt_acc[...], axis=1, keepdims=True)    # (C, 1)
        ce_out[...] = jnp.sum(ce_acc[...], keepdims=True)              # (1, 1)


@functools.partial(jax.jit, static_argnames=("weight_ce", "weight_dice",
                                             "smooth", "do_bg", "tile_hw"))
def dc_and_ce_loss(net_output, target, *, weight_ce=1.0, weight_dice=1.0,
                   smooth=1e-5, do_bg=False, tile_hw=8192):
    """net_output: (B, C, H, W) float logits. target: (B, 1, H, W) int class ids."""
    B, C, H, W = net_output.shape
    HW = H * W
    N = B * HW

    # native class-major layout, no transpose, no upcast (bf16 passes through)
    logits = net_output.reshape(B, C, HW)
    tgt = target.astype(jnp.int32).reshape(B, 1, HW)

    # pixel-tile size: multiple of 128, capped at the (rounded) spatial extent
    t_eff = min(tile_hw, _round_up(HW, 128))
    t_eff = max(t_eff, 128)
    hw_pad = _round_up(HW, t_eff)
    if hw_pad != HW:
        pad = hw_pad - HW
        logits = jnp.pad(logits, ((0, 0), (0, 0), (0, pad)))
        tgt = jnp.pad(tgt, ((0, 0), (0, 0), (0, pad)), constant_values=-1)

    grid = (B, hw_pad // t_eff)

    out_shape = (
        jax.ShapeDtypeStruct((B, 1, 1), jnp.float32),   # CE sum per batch elem
        jax.ShapeDtypeStruct((B, C, 1), jnp.float32),   # tp per batch elem/class
        jax.ShapeDtypeStruct((B, C, 1), jnp.float32),   # sum(p) per b/class
        jax.ShapeDtypeStruct((B, C, 1), jnp.float32),   # onehot count per b/class
    )
    out_specs = (
        pl.BlockSpec((None, 1, 1), lambda b, j: (b, 0, 0)),
        pl.BlockSpec((None, C, 1), lambda b, j: (b, 0, 0)),
        pl.BlockSpec((None, C, 1), lambda b, j: (b, 0, 0)),
        pl.BlockSpec((None, C, 1), lambda b, j: (b, 0, 0)),
    )

    ce_b, tp_b, psum_b, cnt_b = pl.pallas_call(
        _dc_ce_kernel,
        out_shape=out_shape,
        grid_spec=pltpu.PrefetchScalarGridSpec(
            num_scalar_prefetch=0,
            grid=grid,
            in_specs=[
                pl.BlockSpec((None, C, t_eff), lambda b, j: (b, 0, j)),
                pl.BlockSpec((None, 1, t_eff), lambda b, j: (b, 0, j)),
            ],
            out_specs=out_specs,
            scratch_shapes=[
                pltpu.VMEM((C, t_eff), jnp.float32),   # tp
                pltpu.VMEM((C, t_eff), jnp.float32),   # sum(p)
                pltpu.VMEM((C, t_eff), jnp.float32),   # count
                pltpu.VMEM((C, t_eff), jnp.float32),   # CE
            ],
        ),
        compiler_params=pltpu.CompilerParams(
            dimension_semantics=("parallel", "arbitrary")),
    )(logits, tgt)

    # ---- cheap scalar glue (matches nnU-Net SoftDiceLoss / CrossEntropyLoss) ----
    ce_loss = jnp.sum(ce_b) / jnp.float32(N)            # mean over all pixels

    tp = jnp.sum(tp_b[:, :, 0], axis=0)                 # (C,)  batch_dice=True
    psum = jnp.sum(psum_b[:, :, 0], axis=0)
    cnt = jnp.sum(cnt_b[:, :, 0], axis=0)
    fp = psum - tp
    fn = cnt - tp

    nominator = 2.0 * tp + smooth
    denominator = 2.0 * tp + fp + fn + smooth
    dc = nominator / jnp.clip(denominator, 1e-8)
    if not do_bg:
        dc = dc[1:]                                      # drop background class
    dc_loss = -jnp.mean(dc)

    return weight_ce * ce_loss + weight_dice * dc_loss


def _reference_loss(net_output, target, weight_ce=1.0, weight_dice=1.0,
                    smooth=1e-5, do_bg=False):
    """Pure-JAX reference mirroring the PyTorch module (sanity check)."""
    B, C, H, W = net_output.shape
    x = net_output.astype(jnp.float32)
    logp = jax.nn.log_softmax(x, axis=1)
    t = target[:, 0].astype(jnp.int32)                        # (B, H, W)
    onehot = jax.nn.one_hot(t, C, axis=1, dtype=jnp.float32)  # (B, C, H, W)
    ce = -jnp.mean(jnp.sum(logp * onehot, axis=1))
    p = jax.nn.softmax(x, axis=1)
    axes = (0, 2, 3)
    tp = jnp.sum(p * onehot, axis=axes)
    fp = jnp.sum(p * (1.0 - onehot), axis=axes)
    fn = jnp.sum((1.0 - p) * onehot, axis=axes)
    dc = (2.0 * tp + smooth) / jnp.clip(2.0 * tp + fp + fn + smooth, 1e-8)
    if not do_bg:
        dc = dc[1:]
    return weight_ce * ce + weight_dice * (-jnp.mean(dc))


if __name__ == "__main__":
    key = jax.random.PRNGKey(0)

    # case 1: B=2, C=4, 16x16 (tile == full spatial extent, no padding)
    k1, k2, k3, k4 = jax.random.split(key, 4)
    B, C, H, W = 2, 4, 16, 16
    net_output = jax.random.normal(k1, (B, C, H, W), dtype=jnp.float32)
    target = jax.random.randint(k2, (B, 1, H, W), 0, C, dtype=jnp.int32)
    loss = jax.block_until_ready(dc_and_ce_loss(net_output, target))
    ref = _reference_loss(net_output, target)
    assert jnp.allclose(loss, ref, atol=1e-3, rtol=1e-3), (loss, ref)

    # case 2: odd spatial size (15x15) -> exercises the padded-tile mask path
    B2, C2, H2, W2 = 2, 4, 15, 15
    net_output2 = jax.random.normal(k3, (B2, C2, H2, W2), dtype=jnp.float32)
    target2 = jax.random.randint(k4, (B2, 1, H2, W2), 0, C2, dtype=jnp.int32)
    loss2 = jax.block_until_ready(dc_and_ce_loss(net_output2, target2))
    ref2 = _reference_loss(net_output2, target2)
    assert jnp.allclose(loss2, ref2, atol=1e-3, rtol=1e-3), (loss2, ref2)

    print("KERNEL_OK")
</pallas_src>

<mosaic_0001>
module attributes {stable_mosaic.version = 11 : i64} {
  func.func @_dc_ce_kernel(%arg0: i32, %arg1: i32, %arg2: memref<1x4x256xf32, #tpu.memory_space<vmem>>, %arg3: memref<1x1x256xi32, #tpu.memory_space<vmem>>, %arg4: memref<1x1x1xf32, #tpu.memory_space<vmem>>, %arg5: memref<1x4x1xf32, #tpu.memory_space<vmem>>, %arg6: memref<1x4x1xf32, #tpu.memory_space<vmem>>, %arg7: memref<1x4x1xf32, #tpu.memory_space<vmem>>, %arg8: memref<4x256xf32, #tpu.memory_space<vmem>>, %arg9: memref<4x256xf32, #tpu.memory_space<vmem>>, %arg10: memref<4x256xf32, #tpu.memory_space<vmem>>, %arg11: memref<4x256xf32, #tpu.memory_space<vmem>>) attributes {dimension_semantics = [#tpu.dimension_semantics<parallel>, #tpu.dimension_semantics<arbitrary>], iteration_bounds = array<i64: 2, 1>, scalar_prefetch = 0 : i64, scratch_operands = 4 : i64, tpu.core_type = #tpu.core_type<tc>, window_params = [{transform_indices = @transform_0, window_bounds = array<i64: 1, 4, 256>}, {transform_indices = @transform_1, window_bounds = array<i64: 1, 1, 256>}, {transform_indices = @transform_2, window_bounds = array<i64: 1, 1, 1>}, {transform_indices = @transform_3, window_bounds = array<i64: 1, 4, 1>}, {transform_indices = @transform_4, window_bounds = array<i64: 1, 4, 1>}, {transform_indices = @transform_5, window_bounds = array<i64: 1, 4, 1>}]} {
    %c0_i32 = arith.constant 0 : i32
    %0 = arith.cmpi eq, %arg1, %c0_i32 : i32
    %1 = arith.extui %0 : i1 to i32
    %c0_i32_0 = arith.constant 0 : i32
    %2 = arith.cmpi ne, %1, %c0_i32_0 : i32
    scf.if %2 {
      %cst_26 = arith.constant 0.000000e+00 : f32
      %48 = vector.broadcast %cst_26 : f32 to vector<4x256xf32>
      %c0_27 = arith.constant 0 : index
      %c0_28 = arith.constant 0 : index
      %49 = vector.load %arg8[%c0_27, %c0_28] : memref<4x256xf32, #tpu.memory_space<vmem>>, vector<4x256xf32>
      tpu.vector_store %arg8[%c0_27, %c0_28], %48 {strides = array<i32>} : memref<4x256xf32, #tpu.memory_space<vmem>>, vector<4x256xf32>,
      %cst_29 = arith.constant 0.000000e+00 : f32
      %50 = vector.broadcast %cst_29 : f32 to vector<4x256xf32>
      %c0_30 = arith.constant 0 : index
      %c0_31 = arith.constant 0 : index
      %51 = vector.load %arg9[%c0_30, %c0_31] : memref<4x256xf32, #tpu.memory_space<vmem>>, vector<4x256xf32>
      tpu.vector_store %arg9[%c0_30, %c0_31], %50 {strides = array<i32>} : memref<4x256xf32, #tpu.memory_space<vmem>>, vector<4x256xf32>,
      %cst_32 = arith.constant 0.000000e+00 : f32
      %52 = vector.broadcast %cst_32 : f32 to vector<4x256xf32>
      %c0_33 = arith.constant 0 : index
      %c0_34 = arith.constant 0 : index
      %53 = vector.load %arg10[%c0_33, %c0_34] : memref<4x256xf32, #tpu.memory_space<vmem>>, vector<4x256xf32>
      tpu.vector_store %arg10[%c0_33, %c0_34], %52 {strides = array<i32>} : memref<4x256xf32, #tpu.memory_space<vmem>>, vector<4x256xf32>,
      %cst_35 = arith.constant 0.000000e+00 : f32
      %54 = vector.broadcast %cst_35 : f32 to vector<4x256xf32>
      %c0_36 = arith.constant 0 : index
      %c0_37 = arith.constant 0 : index
      %55 = vector.load %arg11[%c0_36, %c0_37] : memref<4x256xf32, #tpu.memory_space<vmem>>, vector<4x256xf32>
      tpu.vector_store %arg11[%c0_36, %c0_37], %54 {strides = array<i32>} : memref<4x256xf32, #tpu.memory_space<vmem>>, vector<4x256xf32>,
    } else {
    }
    %c0 = arith.constant 0 : index
    %c0_1 = arith.constant 0 : index
    %c0_2 = arith.constant 0 : index
    %3 = vector.load %arg2[%c0, %c0_1, %c0_2] : memref<1x4x256xf32, #tpu.memory_space<vmem>>, vector<1x4x256xf32>
    %4 = vector.shape_cast %3 : vector<1x4x256xf32> to vector<4x256xf32>
    %cst = arith.constant dense<0xFF800000> : vector<256xf32>
    %5 = vector.multi_reduction <maximumf>, %4, %cst [0] : vector<4x256xf32> to vector<256xf32>
    %6 = vector.shape_cast %5 : vector<256xf32> to vector<1x256xf32>
    %7 = vector.broadcast %6 : vector<1x256xf32> to vector<4x256xf32>
    %8 = arith.subf %4, %7 : vector<4x256xf32>
    %9 = math.exp %8 : vector<4x256xf32>
    %cst_3 = arith.constant dense<0.000000e+00> : vector<256xf32>
    %10 = vector.multi_reduction <add>, %9, %cst_3 [0] : vector<4x256xf32> to vector<256xf32>
    %11 = vector.shape_cast %10 : vector<256xf32> to vector<1x256xf32>
    %12 = tpu.reciprocal %11 {approx = true} : vector<1x256xf32> -> vector<1x256xf32>
    %13 = vector.broadcast %12 : vector<1x256xf32> to vector<4x256xf32>
    %14 = arith.mulf %9, %13 : vector<4x256xf32>
    %15 = math.log %11 : vector<1x256xf32>
    %c0_4 = arith.constant 0 : index
    %c0_5 = arith.constant 0 : index
    %c0_6 = arith.constant 0 : index
    %16 = vector.load %arg3[%c0_4, %c0_5, %c0_6] : memref<1x1x256xi32, #tpu.memory_space<vmem>>, vector<1x1x256xi32>
    %17 = vector.shape_cast %16 : vector<1x1x256xi32> to vector<1x256xi32>
    %18 = tpu.iota {dimensions = array<i32: 0>} : vector<4x256xi32>
    %19 = vector.broadcast %17 : vector<1x256xi32> to vector<4x256xi32>
    %20 = arith.cmpi eq, %18, %19 : vector<4x256xi32>
    %21 = arith.extui %20 : vector<4x256xi1> to vector<4x256xi32>
    %22 = arith.sitofp %21 : vector<4x256xi32> to vector<4x256xf32>
    %c0_i32_7 = arith.constant 0 : i32
    %23 = vector.broadcast %c0_i32_7 : i32 to vector<1x256xi32>
    %24 = arith.cmpi sge, %17, %23 : vector<1x256xi32>
    %25 = arith.extui %24 : vector<1x256xi1> to vector<1x256xi32>
    %26 = arith.sitofp %25 : vector<1x256xi32> to vector<1x256xf32>
    %27 = vector.broadcast %26 : vector<1x256xf32> to vector<4x256xf32>
    %28 = arith.mulf %14, %27 : vector<4x256xf32>
    %c0_8 = arith.constant 0 : index
    %c0_9 = arith.constant 0 : index
    %29 = vector.load %arg8[%c0_8, %c0_9] : memref<4x256xf32, #tpu.memory_space<vmem>>, vector<4x256xf32>
    %30 = arith.mulf %28, %22 : vector<4x256xf32>
    %31 = arith.addf %29, %30 : vector<4x256xf32>
    %c0_10 = arith.constant 0 : index
    %c0_11 = arith.constant 0 : index
    %32 = vector.load %arg8[%c0_10, %c0_11] : memref<4x256xf32, #tpu.memory_space<vmem>>, vector<4x256xf32>
    tpu.vector_store %arg8[%c0_10, %c0_11], %31 {strides = array<i32>} : memref<4x256xf32, #tpu.memory_space<vmem>>, vector<4x256xf32>,
    %c0_12 = arith.constant 0 : index
    %c0_13 = arith.constant 0 : index
    %33 = vector.load %arg9[%c0_12, %c0_13] : memref<4x256xf32, #tpu.memory_space<vmem>>, vector<4x256xf32>
    %34 = arith.addf %33, %28 : vector<4x256xf32>
    %c0_14 = arith.constant 0 : index
    %c0_15 = arith.constant 0 : index
    %35 = vector.load %arg9[%c0_14, %c0_15] : memref<4x256xf32, #tpu.memory_space<vmem>>, vector<4x256xf32>
    tpu.vector_store %arg9[%c0_14, %c0_15], %34 {strides = array<i32>} : memref<4x256xf32, #tpu.memory_space<vmem>>, vector<4x256xf32>,
    %c0_16 = arith.constant 0 : index
    %c0_17 = arith.constant 0 : index
    %36 = vector.load %arg10[%c0_16, %c0_17] : memref<4x256xf32, #tpu.memory_space<vmem>>, vector<4x256xf32>
    %37 = arith.addf %36, %22 : vector<4x256xf32>
    %c0_18 = arith.constant 0 : index
    %c0_19 = arith.constant 0 : index
    %38 = vector.load %arg10[%c0_18, %c0_19] : memref<4x256xf32, #tpu.memory_space<vmem>>, vector<4x256xf32>
    tpu.vector_store %arg10[%c0_18, %c0_19], %37 {strides = array<i32>} : memref<4x256xf32, #tpu.memory_space<vmem>>, vector<4x256xf32>,
    %c0_20 = arith.constant 0 : index
    %c0_21 = arith.constant 0 : index
    %39 = vector.load %arg11[%c0_20, %c0_21] : memref<4x256xf32, #tpu.memory_space<vmem>>, vector<4x256xf32>
    %40 = vector.broadcast %15 : vector<1x256xf32> to vector<4x256xf32>
    %41 = arith.subf %40, %8 : vector<4x256xf32>
    %42 = arith.mulf %41, %22 : vector<4x256xf32>
    %43 = arith.addf %39, %42 : vector<4x256xf32>
    %c0_22 = arith.constant 0 : index
    %c0_23 = arith.constant 0 : index
    %44 = vector.load %arg11[%c0_22, %c0_23] : memref<4x256xf32, #tpu.memory_space<vmem>>, vector<4x256xf32>
    tpu.vector_store %arg11[%c0_22, %c0_23], %43 {strides = array<i32>} : memref<4x256xf32, #tpu.memory_space<vmem>>, vector<4x256xf32>,
    %c0_i32_24 = arith.constant 0 : i32
    %45 = arith.cmpi eq, %arg1, %c0_i32_24 : i32
    %46 = arith.extui %45 : i1 to i32
    %c0_i32_25 = arith.constant 0 : i32
    %47 = arith.cmpi ne, %46, %c0_i32_25 : i32
    scf.if %47 {
      %c0_26 = arith.constant 0 : index
      %c0_27 = arith.constant 0 : index
      %48 = vector.load %arg8[%c0_26, %c0_27] : memref<4x256xf32, #tpu.memory_space<vmem>>, vector<4x256xf32>
      %cst_28 = arith.constant dense<0.000000e+00> : vector<4xf32>
      %49 = vector.multi_reduction <add>, %48, %cst_28 [1] : vector<4x256xf32> to vector<4xf32>
      %50 = vector.shape_cast %49 : vector<4xf32> to vector<4x1xf32>
      %c0_29 = arith.constant 0 : index
      %c0_30 = arith.constant 0 : index
      %c0_31 = arith.constant 0 : index
      %51 = vector.load %arg5[%c0_29, %c0_30, %c0_31] : memref<1x4x1xf32, #tpu.memory_space<vmem>>, vector<1x4x1xf32>
      %52 = vector.shape_cast %51 : vector<1x4x1xf32> to vector<4x1xf32>
      %53 = vector.shape_cast %50 : vector<4x1xf32> to vector<1x4x1xf32>
      tpu.vector_store %arg5[%c0_29, %c0_30, %c0_31], %53 {strides = array<i32>} : memref<1x4x1xf32, #tpu.memory_space<vmem>>, vector<1x4x1xf32>,
      %c0_32 = arith.constant 0 : index
      %c0_33 = arith.constant 0 : index
      %54 = vector.load %arg9[%c0_32, %c0_33] : memref<4x256xf32, #tpu.memory_space<vmem>>, vector<4x256xf32>
      %cst_34 = arith.constant dense<0.000000e+00> : vector<4xf32>
      %55 = vector.multi_reduction <add>, %54, %cst_34 [1] : vector<4x256xf32> to vector<4xf32>
      %56 = vector.shape_cast %55 : vector<4xf32> to vector<4x1xf32>
      %c0_35 = arith.constant 0 : index
      %c0_36 = arith.constant 0 : index
      %c0_37 = arith.constant 0 : index
      %57 = vector.load %arg6[%c0_35, %c0_36, %c0_37] : memref<1x4x1xf32, #tpu.memory_space<vmem>>, vector<1x4x1xf32>
      %58 = vector.shape_cast %57 : vector<1x4x1xf32> to vector<4x1xf32>
      %59 = vector.shape_cast %56 : vector<4x1xf32> to vector<1x4x1xf32>
      tpu.vector_store %arg6[%c0_35, %c0_36, %c0_37], %59 {strides = array<i32>} : memref<1x4x1xf32, #tpu.memory_space<vmem>>, vector<1x4x1xf32>,
      %c0_38 = arith.constant 0 : index
      %c0_39 = arith.constant 0 : index
      %60 = vector.load %arg10[%c0_38, %c0_39] : memref<4x256xf32, #tpu.memory_space<vmem>>, vector<4x256xf32>
      %cst_40 = arith.constant dense<0.000000e+00> : vector<4xf32>
      %61 = vector.multi_reduction <add>, %60, %cst_40 [1] : vector<4x256xf32> to vector<4xf32>
      %62 = vector.shape_cast %61 : vector<4xf32> to vector<4x1xf32>
      %c0_41 = arith.constant 0 : index
      %c0_42 = arith.constant 0 : index
      %c0_43 = arith.constant 0 : index
      %63 = vector.load %arg7[%c0_41, %c0_42, %c0_43] : memref<1x4x1xf32, #tpu.memory_space<vmem>>, vector<1x4x1xf32>
      %64 = vector.shape_cast %63 : vector<1x4x1xf32> to vector<4x1xf32>
      %65 = vector.shape_cast %62 : vector<4x1xf32> to vector<1x4x1xf32>
      tpu.vector_store %arg7[%c0_41, %c0_42, %c0_43], %65 {strides = array<i32>} : memref<1x4x1xf32, #tpu.memory_space<vmem>>, vector<1x4x1xf32>,
      %c0_44 = arith.constant 0 : index
      %c0_45 = arith.constant 0 : index
      %66 = vector.load %arg11[%c0_44, %c0_45] : memref<4x256xf32, #tpu.memory_space<vmem>>, vector<4x256xf32>
      %67 = vector.shape_cast %66 : vector<4x256xf32> to vector<1x4x256xf32>
      %cst_46 = arith.constant dense<0.000000e+00> : vector<1xf32>
      %68 = vector.multi_reduction <add>, %67, %cst_46 [1, 2] : vector<1x4x256xf32> to vector<1xf32>
      %69 = vector.shape_cast %68 : vector<1xf32> to vector<1x1x1xf32>
      %70 = vector.extract %69[0, 0, 0] : f32 from vector<1x1x1xf32>
      %71 = vector.broadcast %70 : f32 to vector<1x1xf32>
      %c0_47 = arith.constant 0 : index
      %c0_48 = arith.constant 0 : index
      %c0_49 = arith.constant 0 : index
      %72 = vector.load %arg4[%c0_47, %c0_48, %c0_49] : memref<1x1x1xf32, #tpu.memory_space<vmem>>, vector<1x1x1xf32>
      %73 = vector.shape_cast %72 : vector<1x1x1xf32> to vector<1x1xf32>
      %74 = vector.shape_cast %71 : vector<1x1xf32> to vector<1x1x1xf32>
      tpu.vector_store %arg4[%c0_47, %c0_48, %c0_49], %74 {strides = array<i32>} : memref<1x1x1xf32, #tpu.memory_space<vmem>>, vector<1x1x1xf32>,
    } else {
    }
    return
  }
  func.func @transform_0(%arg0: i32, %arg1: i32) -> (i32, i32, i32) {
    %c0_i32 = arith.constant 0 : i32
    %c0_i32_0 = arith.constant 0 : i32
    return %arg0, %c0_i32, %arg1 : i32, i32, i32
  }
  func.func @transform_1(%arg0: i32, %arg1: i32) -> (i32, i32, i32) {
    %c0_i32 = arith.constant 0 : i32
    %c0_i32_0 = arith.constant 0 : i32
    return %arg0, %c0_i32, %arg1 : i32, i32, i32
  }
  func.func @transform_2(%arg0: i32, %arg1: i32) -> (i32, i32, i32) {
    %c0_i32 = arith.constant 0 : i32
    %c0_i32_0 = arith.constant 0 : i32
    %c0_i32_1 = arith.constant 0 : i32
    return %arg0, %c0_i32, %c0_i32_0 : i32, i32, i32
  }
  func.func @transform_3(%arg0: i32, %arg1: i32) -> (i32, i32, i32) {
    %c0_i32 = arith.constant 0 : i32
    %c0_i32_0 = arith.constant 0 : i32
    %c0_i32_1 = arith.constant 0 : i32
    return %arg0, %c0_i32, %c0_i32_0 : i32, i32, i32
  }
  func.func @transform_4(%arg0: i32, %arg1: i32) -> (i32, i32, i32) {
    %c0_i32 = arith.constant 0 : i32
    %c0_i32_0 = arith.constant 0 : i32
    %c0_i32_1 = arith.constant 0 : i32
    return %arg0, %c0_i32, %c0_i32_0 : i32, i32, i32
  }
  func.func @transform_5(%arg0: i32, %arg1: i32) -> (i32, i32, i32) {
    %c0_i32 = arith.constant 0 : i32
    %c0_i32_0 = arith.constant 0 : i32
    %c0_i32_1 = arith.constant 0 : i32
    return %arg0, %c0_i32, %c0_i32_0 : i32, i32, i32
  }
}

</mosaic_0001>

<llo_original>
// kernel: dc_and_ce_loss.1
$region0: #{dc_and_ce_loss.1}
  #allocation0 [shape = 'u32[]', space=smem, size = 0x4, offset = 0x4, fixed_abs, tag = 'smem constant byte address 0x4 - core index']
  #allocation1 [shape = 'u32[144,128]{1,0:T(1,128)}', space=vmem, size = 0x12000, scoped, tag = 'internal scratch']
  #allocation2 [shape = 'f32[4,256]{1,0:T(4,128)}', space=vmem, size = 0x1000, scoped, tag = 'scratch operand']
  #allocation3 [shape = 'f32[4,256]{1,0:T(4,128)}', space=vmem, size = 0x1000, scoped, tag = 'scratch operand']
  #allocation4 [shape = 'f32[4,256]{1,0:T(4,128)}', space=vmem, size = 0x1000, scoped, tag = 'scratch operand']
  #allocation5 [shape = 'f32[4,256]{1,0:T(4,128)}', space=vmem, size = 0x1000, scoped, tag = 'scratch operand']
  %s0 = inlined_call_operand.vmem [shape: f32[2,4,256], index: 0, kind: input, shape index: {}]
  %s1 = inlined_call_operand.vmem [shape: s32[2,1,256], index: 1, kind: input, shape index: {}]
  %s2 = inlined_call_operand.vmem [shape: f32[2,1,1], index: 2, kind: output, shape index: {0}]
  %s3 = inlined_call_operand.vmem [shape: f32[2,4,1], index: 3, kind: output, shape index: {1}]
  %s4 = inlined_call_operand.vmem [shape: f32[2,4,1], index: 4, kind: output, shape index: {2}]
  %s5 = inlined_call_operand.vmem [shape: f32[2,4,1], index: 5, kind: output, shape index: {3}]
  %6 = xla_tuple %s2, %s3, %s4, %s5
  %s7 = sld [smem:[#allocation0]]
  $region73: #{dc_and_ce_loss.1} parent=0
    _
  %s9 = ssub.s32 1, %s7
  %s10 = scalar_select 0, %s9, %s7
  loop: start=0, step=1, limit=4
  $region2: #{dc_and_ce_loss.1} parent=0 // loop_pre_header
    _
  $region3: #{dc_and_ce_loss.1} parent=0 // loop_header
    %s12 = sphi 0, %s16
    %p13 = scmp.ge.s32.totalorder %s12, 4
    %s19 = sphi 0, %s31
    %s20 = sphi 0, %s27
    %s21 = sphi 0, %s19
    %s22 = sphi 0, %s20
    %s23 = sphi 0, %s21
    %s24 = sphi 0, %s22
    %s36 = sphi 0, %s38
    %s39 = sphi 0, %s36
    %s40 = sphi 0, %s39
    %s56 = sphi 0, %s40
    %s64 = sphi 0, %s66
    %s67 = sphi 0, %s64
    %s68 = sphi 0, %s67
    %s84 = sphi 0, %s68
    %s90 = sphi 0, %s92
    %s93 = sphi 0, %s90
    %s94 = sphi 0, %s93
    %s110 = sphi 0, %s94
    %s116 = sphi 0, %s118
    %s119 = sphi 0, %s116
    %s120 = sphi 0, %s119
    %s136 = sphi 0, %s120
    %s142 = sphi 0, %s144
    %s145 = sphi 0, %s142
    %s146 = sphi 0, %s145
    %s162 = sphi 0, %s146
    %s168 = sphi 0, %s170
    %s171 = sphi 0, %s168
    %s172 = sphi 0, %s171
    %s188 = sphi 0, %s172
  $region4: #{dc_and_ce_loss.1} parent=0 // loop_header_branch
    %15 = sbr.rel (%p13) target = $region8
  $region5: #{dc_and_ce_loss.1} parent=0 // loop_body
    %s17 = ssub.s32 %s12, 1
    %s18 = ssub.s32 %s12, 2
    %s25 = sadd.s32 1, %s20
    %p26 = scmp.ge.s32.totalorder %s25, 1
    %s27 = scalar_select %p26, 0, %s25
    %s28 = sadd.s32 1, %s19
    %s29 = scalar_select %p26, %s28, %s19
    %p30 = scmp.ge.s32.totalorder %s29, 2
    %s31 = scalar_select %p30, 0, %s29
    %s32 = ssub.s32 %s19, %s31
    %s33 = ssub.s32 %s20, %s27
    %s34 = sor.u32 %s32, %s33
    %p35 = scmp.eq.s32.totalorder %s34, 0
    %s37 = sadd.s32 %s36, 1
    %s38 = scalar_select %p35, %s36, %s37
    %p41 = pneg %p35
    %p42 = scmp.eq.s32.totalorder %s12, 1
    %p43 = por %p41, %p42
    %p44 = scmp.ne.s32.totalorder %s36, %s39
    %p45 = scmp.eq.s32.totalorder %s12, 0
    %p46 = por %p44, %p45
    %p47 = scmp.ne.s32.totalorder %s36, %s39
    %p48 = scmp.eq.s32.totalorder %s17, 1
    %p49 = por %p47, %p48
    %p50 = scmp.ne.s32.totalorder %s39, %s40
    %p51 = scmp.eq.s32.totalorder %s17, 0
    %p52 = por %p50, %p51
    %p53 = scmp.ne.s32.totalorder %s39, %s40
    %p54 = scmp.eq.s32.totalorder %s18, 1
    %p55 = por %p53, %p54
    %p57 = scmp.ne.s32.totalorder %s40, %s56
    %p58 = scmp.eq.s32.totalorder %s18, 0
    %p59 = por %p57, %p58
    %s60 = ssub.s32 %s19, %s31
    %s61 = ssub.s32 %s20, %s27
    %s62 = sor.u32 %s60, %s61
    %p63 = scmp.eq.s32.totalorder %s62, 0
    %s65 = sadd.s32 %s64, 1
    %s66 = scalar_select %p63, %s64, %s65
    %p69 = pneg %p63
    %p70 = scmp.eq.s32.totalorder %s12, 1
    %p71 = por %p69, %p70
    %p72 = scmp.ne.s32.totalorder %s64, %s67
    %p73 = scmp.eq.s32.totalorder %s12, 0
    %p74 = por %p72, %p73
    %p75 = scmp.ne.s32.totalorder %s64, %s67
    %p76 = scmp.eq.s32.totalorder %s17, 1
    %p77 = por %p75, %p76
    %p78 = scmp.ne.s32.totalorder %s67, %s68
    %p79 = scmp.eq.s32.totalorder %s17, 0
    %p80 = por %p78, %p79
    %p81 = scmp.ne.s32.totalorder %s67, %s68
    %p82 = scmp.eq.s32.totalorder %s18, 1
    %p83 = por %p81, %p82
    %p85 = scmp.ne.s32.totalorder %s68, %s84
    %p86 = scmp.eq.s32.totalorder %s18, 0
    %p87 = por %p85, %p86
    %s88 = ssub.s32 %s19, %s31
    %p89 = scmp.eq.s32.totalorder %s88, 0
    %s91 = sadd.s32 %s90, 1
    %s92 = scalar_select %p89, %s90, %s91
    %p95 = pneg %p89
    %p96 = scmp.eq.s32.totalorder %s12, 1
    %p97 = por %p95, %p96
    %p98 = scmp.ne.s32.totalorder %s90, %s93
    %p99 = scmp.eq.s32.totalorder %s12, 0
    %p100 = por %p98, %p99
    %p101 = scmp.ne.s32.totalorder %s90, %s93
    %p102 = scmp.eq.s32.totalorder %s17, 1
    %p103 = por %p101, %p102
    %p104 = scmp.ne.s32.totalorder %s93, %s94
    %p105 = scmp.eq.s32.totalorder %s17, 0
    %p106 = por %p104, %p105
    %p107 = scmp.ne.s32.totalorder %s93, %s94
    %p108 = scmp.eq.s32.totalorder %s18, 1
    %p109 = por %p107, %p108
    %p111 = scmp.ne.s32.totalorder %s94, %s110
    %p112 = scmp.eq.s32.totalorder %s18, 0
    %p113 = por %p111, %p112
    %s114 = ssub.s32 %s19, %s31
    %p115 = scmp.eq.s32.totalorder %s114, 0
    %s117 = sadd.s32 %s116, 1
    %s118 = scalar_select %p115, %s116, %s117
    %p121 = pneg %p115
    %p122 = scmp.eq.s32.totalorder %s12, 1
    %p123 = por %p121, %p122
    %p124 = scmp.ne.s32.totalorder %s116, %s119
    %p125 = scmp.eq.s32.totalorder %s12, 0
    %p126 = por %p124, %p125
    %p127 = scmp.ne.s32.totalorder %s116, %s119
    %p128 = scmp.eq.s32.totalorder %s17, 1
    %p129 = por %p127, %p128
    %p130 = scmp.ne.s32.totalorder %s119, %s120
    %p131 = scmp.eq.s32.totalorder %s17, 0
    %p132 = por %p130, %p131
    %p133 = scmp.ne.s32.totalorder %s119, %s120
    %p134 = scmp.eq.s32.totalorder %s18, 1
    %p135 = por %p133, %p134
    %p137 = scmp.ne.s32.totalorder %s120, %s136
    %p138 = scmp.eq.s32.totalorder %s18, 0
    %p139 = por %p137, %p138
    %s140 = ssub.s32 %s19, %s31
    %p141 = scmp.eq.s32.totalorder %s140, 0
    %s143 = sadd.s32 %s142, 1
    %s144 = scalar_select %p141, %s142, %s143
    %p147 = pneg %p141
    %p148 = scmp.eq.s32.totalorder %s12, 1
    %p149 = por %p147, %p148
    %p150 = scmp.ne.s32.totalorder %s142, %s145
    %p151 = scmp.eq.s32.totalorder %s12, 0
    %p152 = por %p150, %p151
    %p153 = scmp.ne.s32.totalorder %s142, %s145
    %p154 = scmp.eq.s32.totalorder %s17, 1
    %p155 = por %p153, %p154
    %p156 = scmp.ne.s32.totalorder %s145, %s146
    %p157 = scmp.eq.s32.totalorder %s17, 0
    %p158 = por %p156, %p157
    %p159 = scmp.ne.s32.totalorder %s145, %s146
    %p160 = scmp.eq.s32.totalorder %s18, 1
    %p161 = por %p159, %p160
    %p163 = scmp.ne.s32.totalorder %s146, %s162
    %p164 = scmp.eq.s32.totalorder %s18, 0
    %p165 = por %p163, %p164
    %s166 = ssub.s32 %s19, %s31
    %p167 = scmp.eq.s32.totalorder %s166, 0
    %s169 = sadd.s32 %s168, 1
    %s170 = scalar_select %p167, %s168, %s169
    %p173 = pneg %p167
    %p174 = scmp.eq.s32.totalorder %s12, 1
    %p175 = por %p173, %p174
    %p176 = scmp.ne.s32.totalorder %s168, %s171
    %p177 = scmp.eq.s32.totalorder %s12, 0
    %p178 = por %p176, %p177
    %p179 = scmp.ne.s32.totalorder %s168, %s171
    %p180 = scmp.eq.s32.totalorder %s17, 1
    %p181 = por %p179, %p180
    %p182 = scmp.ne.s32.totalorder %s171, %s172
    %p183 = scmp.eq.s32.totalorder %s17, 0
    %p184 = por %p182, %p183
    %p185 = scmp.ne.s32.totalorder %s171, %s172
    %p186 = scmp.eq.s32.totalorder %s18, 1
    %p187 = por %p185, %p186
    %p189 = scmp.ne.s32.totalorder %s172, %s188
    %p190 = scmp.eq.s32.totalorder %s18, 0
    %p191 = por %p189, %p190
    %p192 = scmp.le.s32.totalorder 1, %s12
    %p193 = scmp.lt.s32.totalorder %s12, 3
    %p194 = pnand %p192, %p193
    %p195 = pneg %p194
    // Predicated region
    $region9: #{dc_and_ce_loss.1} parent=5 // pred_check
      _
    $region10: #{dc_and_ce_loss.1} parent=5 // pred_check_branch
      %197 = sbr.rel (%p194) target = $region12
    $region11: #{dc_and_ce_loss.1} parent=5 // pred_region
      %s198 = ssub.s32 %s12, 1
    $region12: #{dc_and_ce_loss.1} parent=5 // pred_fallthru
      _
    %p199 = scmp.lt.s32.totalorder %s12, 2
    // Predicated region
    $region13: #{dc_and_ce_loss.1} parent=5 // pred_check
      %p200 = pneg %p199
    $region14: #{dc_and_ce_loss.1} parent=5 // pred_check_branch
      %202 = sbr.rel (%p200) target = $region16
    $region15: #{dc_and_ce_loss.1} parent=5 // pred_region
      // Predicated region
      $region17: #{dc_and_ce_loss.1} parent=15 // pred_check
        %p203 = pneg %p46
      $region18: #{dc_and_ce_loss.1} parent=15 // pred_check_branch
        %205 = sbr.rel (%p203) target = $region20
      $region19: #{dc_and_ce_loss.1} parent=15 // pred_region
        %s206 = smul.u32 2, %s20
        %p207 = scmp.lt.s32.totalorder %s19, 1
        %s208 = scalar_select %p207, %s19, 1
        %p209 = scmp.lt.s32.totalorder %s206, 1
        %s210 = scalar_select %p209, %s206, 1
        %s211 = smul.addr %s208, 2
        %s212 = sadd.s32 %s210, %s211
        %s213 = smul.addr %s212, 4
        %s214 = scalar_lea.vmem %s0, %s213
        %s215 = smul.u32 2, %s20
      $region20: #{dc_and_ce_loss.1} parent=15 // pred_fallthru
        _
      // Predicated region
      $region21: #{dc_and_ce_loss.1} parent=15 // pred_check
        %p216 = pneg %p74
      $region22: #{dc_and_ce_loss.1} parent=15 // pred_check_branch
        %218 = sbr.rel (%p216) target = $region24
      $region23: #{dc_and_ce_loss.1} parent=15 // pred_region
        %s219 = smul.u32 2, %s20
        %p220 = scmp.lt.s32.totalorder %s19, 1
        %s221 = scalar_select %p220, %s19, 1
        %p222 = scmp.lt.s32.totalorder %s219, 1
        %s223 = scalar_select %p222, %s219, 1
        %s224 = smul.addr %s221, 2
        %s225 = sadd.s32 %s223, %s224
        %s226 = scalar_lea.vmem %s1, %s225
        %s227 = smul.u32 2, %s20
      $region24: #{dc_and_ce_loss.1} parent=15 // pred_fallthru
        _
    $region16: #{dc_and_ce_loss.1} parent=5 // pred_fallthru
      _
    %p228 = scmp.le.s32.totalorder 1, %s12
    %p229 = scmp.lt.s32.totalorder %s12, 3
    %p230 = pnand %p228, %p229
    %p231 = pneg %p230
    // Predicated region
    $region25: #{dc_and_ce_loss.1} parent=5 // pred_check
      _
    $region26: #{dc_and_ce_loss.1} parent=5 // pred_check_branch
      %233 = sbr.rel (%p230) target = $region28
    $region27: #{dc_and_ce_loss.1} parent=5 // pred_region
      %s234 = ssub.s32 %s12, 1
      %s235 = smul.u32 2, %s22
      %p236 = scmp.lt.s32.totalorder %s21, 1
      %s237 = scalar_select %p236, %s21, 1
      %p238 = scmp.lt.s32.totalorder %s235, 1
      %s239 = scalar_select %p238, %s235, 1
      %s240 = smul.addr %s237, 2
      %s241 = sadd.s32 %s239, %s240
      %s242 = smul.addr %s241, 4
      %s243 = scalar_lea.vmem %s0, %s242
      %p244 = pneg %p52
      %p245 = pneg %p49
      %s246 = smul.u32 2, %s22
      %p247 = scmp.lt.s32.totalorder %s21, 1
      %s248 = scalar_select %p247, %s21, 1
      %p249 = scmp.lt.s32.totalorder %s246, 1
      %s250 = scalar_select %p249, %s246, 1
      %s251 = smul.addr %s248, 2
      %s252 = sadd.s32 %s250, %s251
      %s253 = scalar_lea.vmem %s1, %s252
      %p254 = pneg %p80
      %p255 = pneg %p77
      %p256 = pneg %p106
      %p257 = pneg %p103
      %p258 = scmp.lt.s32.totalorder %s21, 1
      %s259 = scalar_select %p258, %s21, 1
      %s260 = scalar_lea.vmem %s2, %s259
      %p261 = pneg %p132
      %p262 = pneg %p129
      %p263 = scmp.lt.s32.totalorder %s21, 1
      %s264 = scalar_select %p263, %s21, 1
      %s265 = smul.addr %s264, 4
      %s266 = scalar_lea.vmem %s3, %s265
      %p267 = pneg %p158
      %p268 = pneg %p155
      %p269 = scmp.lt.s32.totalorder %s21, 1
      %s270 = scalar_select %p269, %s21, 1
      %s271 = smul.addr %s270, 4
      %s272 = scalar_lea.vmem %s4, %s271
      %p273 = pneg %p184
      %p274 = pneg %p181
      %p275 = scmp.lt.s32.totalorder %s21, 1
      %s276 = scalar_select %p275, %s21, 1
      %s277 = smul.addr %s276, 4
      %s278 = scalar_lea.vmem %s5, %s277
      %s279 = smul.u32 2, %s22
      %p280 = scmp.lt.s32.totalorder %s21, 1
      %s281 = scalar_select %p280, %s21, 1
      %p282 = scmp.lt.s32.totalorder %s279, 1
      %s283 = scalar_select %p282, %s279, 1
      %s284 = smul.addr %s281, 2
      %s285 = sadd.s32 %s283, %s284
      %s286 = smul.addr %s285, 4
      %s287 = scalar_lea.vmem %s0, %s286
      %s288 = smul.u32 2, %s22
      %s289 = smul.u32 2, %s22
      %p290 = scmp.lt.s32.totalorder %s21, 1
      %s291 = scalar_select %p290, %s21, 1
      %p292 = scmp.lt.s32.totalorder %s289, 1
      %s293 = scalar_select %p292, %s289, 1
      %s294 = smul.addr %s291, 2
      %s295 = sadd.s32 %s293, %s294
      %s296 = scalar_lea.vmem %s1, %s295
      %s297 = smul.u32 2, %s22
      %p298 = scmp.lt.s32.totalorder %s21, 1
      %s299 = scalar_select %p298, %s21, 1
      %s300 = scalar_lea.vmem %s2, %s299
      %p301 = scmp.lt.s32.totalorder %s21, 1
      %s302 = scalar_select %p301, %s21, 1
      %s303 = smul.addr %s302, 4
      %s304 = scalar_lea.vmem %s3, %s303
      %p305 = scmp.lt.s32.totalorder %s21, 1
      %s306 = scalar_select %p305, %s21, 1
      %s307 = smul.addr %s306, 4
      %s308 = scalar_lea.vmem %s4, %s307
      %p309 = scmp.lt.s32.totalorder %s21, 1
      %s310 = scalar_select %p309, %s21, 1
      %s311 = smul.addr %s310, 4
      %s312 = scalar_lea.vmem %s5, %s311
      %p313 = scmp.eq.s32.totalorder %s22, 0
      // Predicated region
      $region29: #{dc_and_ce_loss.1} parent=27 // pred_check
        %p314 = pneg %p313
      $region30: #{dc_and_ce_loss.1} parent=27 // pred_check_branch
        %316 = sbr.rel (%p314) target = $region32
      $region31: #{dc_and_ce_loss.1} parent=27 // pred_region
        %317 = vst [vmem:[#allocation2] sm:$0xff] 0.0
        %318 = vst [vmem:[#allocation3] sm:$0xff] 0.0
        %319 = vst [vmem:[#allocation4] sm:$0xff] 0.0
        %320 = vst [vmem:[#allocation5] sm:$0xff] 0.0
      $region32: #{dc_and_ce_loss.1} parent=27 // pred_fallthru
        _
      %v321 = vld [vmem:[%s287] sm:$0xff]
      %v323 = vcombine.high %v321, %v321
      %vm325 = vcmask 1043456
      %v326 = vsel %vm325, %v321, -inf
      %v327 = vrot.slane %v326, 4
      %v328 = vmax.f32 %v326, %v327
      %v329 = vrot.slane %v328, 2
      %v330 = vmax.f32 %v328, %v329
      %v331 = vrot.slane %v330, 1
      %v332 = vmax.f32 %v330, %v331
      %v333 = vsel %vm325, %v323, -inf
      %v334 = vrot.slane %v333, 4
      %v335 = vmax.f32 %v333, %v334
      %v336 = vrot.slane %v335, 2
      %v337 = vmax.f32 %v335, %v336
      %v338 = vrot.slane %v337, 1
      %v339 = vmax.f32 %v337, %v338
      %v342 = vcombine.low %v332, %v339
      %v344 = vsub.f32 %v321, %v342
      %v345 = vmul.f32 %v344, 1.442695
      %v346 = vpow.pop %v345
      %v348 = vcombine.high %v346, %v346
      %v350 = vsel %vm325, %v346, 0.0
      %v351 = vrot.slane %v350, 4
      %v352 = vadd.f32 %v350, %v351
      %v353 = vrot.slane %v352, 2
      %v354 = vadd.f32 %v352, %v353
      %v355 = vrot.slane %v354, 1
      %v356 = vadd.f32 %v354, %v355
      %v357 = vsel %vm325, %v348, 0.0
      %v358 = vrot.slane %v357, 4
      %v359 = vadd.f32 %v357, %v358
      %v360 = vrot.slane %v359, 2
      %v361 = vadd.f32 %v359, %v360
      %v362 = vrot.slane %v361, 1
      %v363 = vadd.f32 %v361, %v362
      %v364 = vrcp.pop %v356
      %v365 = vrcp.pop %v363
      %v368 = vcombine.low %v364, %v365
      %v370 = vmul.f32 %v346, %v368
      %v371 = vlog2.pop %v356
      %v372 = vmul.f32 %v371, 0.6931472
      %v373 = vlog2.pop %v363
      %v374 = vmul.f32 %v373, 0.6931472
      %v375 = vld [vmem:[%s296] sm:$0x3]
      %v376 = vlaneseq
      %v377 = vshrl.u32 %v376, 7
      %v378 = vlaneseq
      %v379 = vshrl.u32 %v378, 7
      %v380 = vsub.s32 0, %v379
      %v381 = vrot.slane %v375, %v380
      %v382 = vlaneseq
      %v383 = vshrl.u32 %v382, 7
      %v384 = vsub.s32 1, %v383
      %v385 = vrot.slane %v375, %v384
      %vm386 = vcmp.eq.s32.totalorder %v377, %v381
      %vm387 = vcmp.eq.s32.totalorder %v377, %v385
      %v388 = vsel %vm386, 1, 0
      %v389 = vsel %vm387, 1, 0
      %v390 = vcvt.s32.f32 %v388
      %v391 = vcvt.s32.f32 %v389
      %vm392 = vcmp.ge.s32.totalorder %v375, 0
      %v393 = vsel %vm392, 1, 0
      %v394 = vcvt.s32.f32 %v393
      %v396 = vlaneseq
      %v397 = vshrl.u32 %v396, 7
      %v398 = vsub.s32 0, %v397
      %v399 = vrot.slane %v394, %v398
      %v400 = vlaneseq
      %v401 = vshrl.u32 %v400, 7
      %v402 = vsub.s32 1, %v401
      %v403 = vrot.slane %v394, %v402
      %v404 = vcombine.low %v399, %v403
      %v406 = vmul.f32 %v370, %v404
      %v407 = vld [vmem:[#allocation2] sm:$0xff]
      %v410 = vcombine.low %v390, %v391
      %v412 = vmul.f32 %v406, %v410
      %v413 = vadd.f32 %v407, %v412
      %414 = vst [vmem:[#allocation2] sm:$0xff] %v413
      %v415 = vld [vmem:[#allocation3] sm:$0xff]
      %v416 = vadd.f32 %v415, %v406
      %417 = vst [vmem:[#allocation3] sm:$0xff] %v416
      %v418 = vld [vmem:[#allocation4] sm:$0xff]
      %v419 = vadd.f32 %v418, %v410
      %420 = vst [vmem:[#allocation4] sm:$0xff] %v419
      %v421 = vld [vmem:[#allocation5] sm:$0xff]
      %v423 = vcombine.high %v344, %v344
      %v425 = vsub.f32 %v372, %v344
      %v426 = vsub.f32 %v374, %v423
      %v427 = vmul.f32 %v425, %v390
      %v428 = vmul.f32 %v426, %v391
      %v431 = vcombine.low %v427, %v428
      %v433 = vadd.f32 %v421, %v431
      %434 = vst [vmem:[#allocation5] sm:$0xff] %v433
      // Predicated region
      $region33: #{dc_and_ce_loss.1} parent=27 // pred_check
        %p435 = pneg %p313
      $region34: #{dc_and_ce_loss.1} parent=27 // pred_check_branch
        %437 = sbr.rel (%p435) target = $region36
      $region35: #{dc_and_ce_loss.1} parent=27 // pred_region
        %v438 = vld [vmem:[#allocation2] sm:$0xff]
        %v440 = vcombine.high %v438, %v438
        %v442 = vsel %vm325, %v438, 0.0
        %v443 = vsel %vm325, %v440, 0.0
        %v444 = vadd.f32 %v442, %v443
        %445 = vadd.xlane.f32.xlu0 %v444
        %v446 = vpop.xlane.xlu0 %445
        %vm447 = vcmask 3072
        %448 = vst.msk [vmem:[%s304] sm:$0xf] %vm447, %v446
        %v449 = vld [vmem:[#allocation3] sm:$0xff]
        %v451 = vcombine.high %v449, %v449
        %v453 = vsel %vm325, %v449, 0.0
        %v454 = vsel %vm325, %v451, 0.0
        %v455 = vadd.f32 %v453, %v454
        %456 = vadd.xlane.f32.xlu0 %v455
        %v457 = vpop.xlane.xlu0 %456
        %458 = vst.msk [vmem:[%s308] sm:$0xf] %vm447, %v457
        %v459 = vld [vmem:[#allocation4] sm:$0xff]
        %v461 = vcombine.high %v459, %v459
        %v463 = vsel %vm325, %v459, 0.0
        %v464 = vsel %vm325, %v461, 0.0
        %v465 = vadd.f32 %v463, %v464
        %466 = vadd.xlane.f32.xlu0 %v465
        %v467 = vpop.xlane.xlu0 %466
        %468 = vst.msk [vmem:[%s312] sm:$0xf] %vm447, %v467
        %v469 = vld [vmem:[#allocation5] sm:$0xff]
        %v471 = vcombine.high %v469, %v469
        %v473 = vsel %vm325, %v469, 0.0
        %v474 = vsel %vm325, %v471, 0.0
        %v475 = vadd.f32 %v473, %v474
        %476 = vadd.xlane.f32.xlu0 %v475
        %v477 = vpop.xlane.xlu0 %476
        %v478 = vrot.slane %v477, 4
        %v479 = vadd.f32 %v477, %v478
        %v480 = vrot.slane %v479, 2
        %v481 = vadd.f32 %v479, %v480
        %v482 = vrot.slane %v481, 1
        %v483 = vadd.f32 %v481, %v482
        %s484 = vtos %v483
        %v485 = vstv %s484
        %vm486 = vcmask 0
        %487 = vst.msk [vmem:[%s300] sm:$0x1] %vm486, %v485
      $region36: #{dc_and_ce_loss.1} parent=27 // pred_fallthru
        _
      %p488 = scmp.lt.s32.totalorder %s21, 1
      %s489 = scalar_select %p488, %s21, 1
      %s490 = scalar_lea.vmem %s2, %s489
      %p491 = scmp.lt.s32.totalorder %s21, 1
      %s492 = scalar_select %p491, %s21, 1
      %s493 = smul.addr %s492, 4
      %s494 = scalar_lea.vmem %s3, %s493
      %p495 = scmp.lt.s32.totalorder %s21, 1
      %s496 = scalar_select %p495, %s21, 1
      %s497 = smul.addr %s496, 4
      %s498 = scalar_lea.vmem %s4, %s497
      %p499 = scmp.lt.s32.totalorder %s21, 1
      %s500 = scalar_select %p499, %s21, 1
      %s501 = smul.addr %s500, 4
      %s502 = scalar_lea.vmem %s5, %s501
      // Predicated region
      $region37: #{dc_and_ce_loss.1} parent=27 // pred_check
        %p503 = pneg %p103
      $region38: #{dc_and_ce_loss.1} parent=27 // pred_check_branch
        %505 = sbr.rel (%p503) target = $region40
      $region39: #{dc_and_ce_loss.1} parent=27 // pred_region
        _
      $region40: #{dc_and_ce_loss.1} parent=27 // pred_fallthru
        _
      // Predicated region
      $region41: #{dc_and_ce_loss.1} parent=27 // pred_check
        %p506 = pneg %p129
      $region42: #{dc_and_ce_loss.1} parent=27 // pred_check_branch
        %508 = sbr.rel (%p506) target = $region44
      $region43: #{dc_and_ce_loss.1} parent=27 // pred_region
        _
      $region44: #{dc_and_ce_loss.1} parent=27 // pred_fallthru
        _
      // Predicated region
      $region45: #{dc_and_ce_loss.1} parent=27 // pred_check
        %p509 = pneg %p155
      $region46: #{dc_and_ce_loss.1} parent=27 // pred_check_branch
        %511 = sbr.rel (%p509) target = $region48
      $region47: #{dc_and_ce_loss.1} parent=27 // pred_region
        _
      $region48: #{dc_and_ce_loss.1} parent=27 // pred_fallthru
        _
      // Predicated region
      $region49: #{dc_and_ce_loss.1} parent=27 // pred_check
        %p512 = pneg %p181
      $region50: #{dc_and_ce_loss.1} parent=27 // pred_check_branch
        %514 = sbr.rel (%p512) target = $region52
      $region51: #{dc_and_ce_loss.1} parent=27 // pred_region
        _
      $region52: #{dc_and_ce_loss.1} parent=27 // pred_fallthru
        _
    $region28: #{dc_and_ce_loss.1} parent=5 // pred_fallthru
      _
    %p515 = scmp.le.s32.totalorder 2, %s12
    // Predicated region
    $region53: #{dc_and_ce_loss.1} parent=5 // pred_check
      %p516 = pneg %p515
    $region54: #{dc_and_ce_loss.1} parent=5 // pred_check_branch
      %518 = sbr.rel (%p516) target = $region56
    $region55: #{dc_and_ce_loss.1} parent=5 // pred_region
      %s519 = ssub.s32 %s12, 2
      // Predicated region
      $region57: #{dc_and_ce_loss.1} parent=55 // pred_check
        %p520 = pneg %p109
      $region58: #{dc_and_ce_loss.1} parent=55 // pred_check_branch
        %522 = sbr.rel (%p520) target = $region60
      $region59: #{dc_and_ce_loss.1} parent=55 // pred_region
        %p523 = scmp.lt.s32.totalorder %s23, 1
        %s524 = scalar_select %p523, %s23, 1
        %s525 = scalar_lea.vmem %s2, %s524
      $region60: #{dc_and_ce_loss.1} parent=55 // pred_fallthru
        _
      // Predicated region
      $region61: #{dc_and_ce_loss.1} parent=55 // pred_check
        %p526 = pneg %p135
      $region62: #{dc_and_ce_loss.1} parent=55 // pred_check_branch
        %528 = sbr.rel (%p526) target = $region64
      $region63: #{dc_and_ce_loss.1} parent=55 // pred_region
        %p529 = scmp.lt.s32.totalorder %s23, 1
        %s530 = scalar_select %p529, %s23, 1
        %s531 = smul.addr %s530, 4
        %s532 = scalar_lea.vmem %s3, %s531
      $region64: #{dc_and_ce_loss.1} parent=55 // pred_fallthru
        _
      // Predicated region
      $region65: #{dc_and_ce_loss.1} parent=55 // pred_check
        %p533 = pneg %p161
      $region66: #{dc_and_ce_loss.1} parent=55 // pred_check_branch
        %535 = sbr.rel (%p533) target = $region68
      $region67: #{dc_and_ce_loss.1} parent=55 // pred_region
        %p536 = scmp.lt.s32.totalorder %s23, 1
        %s537 = scalar_select %p536, %s23, 1
        %s538 = smul.addr %s537, 4
        %s539 = scalar_lea.vmem %s4, %s538
      $region68: #{dc_and_ce_loss.1} parent=55 // pred_fallthru
        _
      // Predicated region
      $region69: #{dc_and_ce_loss.1} parent=55 // pred_check
        %p540 = pneg %p187
      $region70: #{dc_and_ce_loss.1} parent=55 // pred_check_branch
        %542 = sbr.rel (%p540) target = $region72
      $region71: #{dc_and_ce_loss.1} parent=55 // pred_region
        %p543 = scmp.lt.s32.totalorder %s23, 1
        %s544 = scalar_select %p543, %s23, 1
        %s545 = smul.addr %s544, 4
        %s546 = scalar_lea.vmem %s5, %s545
      $region72: #{dc_and_ce_loss.1} parent=55 // pred_fallthru
        _
    $region56: #{dc_and_ce_loss.1} parent=5 // pred_fallthru
      _
  $region6: #{dc_and_ce_loss.1} parent=0 // loop_footer
    %s16 = sadd.s32 1, %s12
  $region7: #{dc_and_ce_loss.1} parent=0 // loop_footer_branch
    %11 = sbr.rel target = $region3
  $region8: #{dc_and_ce_loss.1} parent=0 // loop_exit
    _

</llo_original>
